<compile_context>
chip_gen: v7x
topology: tpu7x:2x2x1
jax: 0.10.0
libtpu: 0.0.40
codegen_flags: <defaults>
</compile_context>

<pallas_src>
import functools
import math

import jax
import jax.numpy as jnp
from jax import lax
from jax.experimental import pallas as pl
from jax.experimental.pallas import tpu as pltpu


# ----------------------------------------------------------------------------
# Stand-in per-point MLP "model": both heads fused into one (2H,3)/(6,2H)
# block-diagonal MLP, gridded over batch, channels-first everywhere.
# ----------------------------------------------------------------------------
def _pointnet_kernel(x_ref, w1t_ref, b1_ref, w2t_ref, b2_ref, o_ref):
    x = x_ref[0]                                                   # (3, N)
    h = jnp.dot(w1t_ref[...], x, preferred_element_type=jnp.float32) + b1_ref[...]
    h = jnp.maximum(h, 0.0)                                        # (2H, N)
    o = jnp.dot(w2t_ref[...], h, preferred_element_type=jnp.float32) + b2_ref[...]
    o_ref[0] = jnp.tanh(o)                                         # (6, N)


# ----------------------------------------------------------------------------
# Fused EMD (stabilized-scaling Sinkhorn, both heads interleaved) + expansion
# penalty surrogate, one grid step per batch item.
# ----------------------------------------------------------------------------
def _emd_pen_kernel(o_ref, gt_ref, emd1_ref, emd2_ref, pen_ref, *,
                    iters, n, eps, window):
    f32 = jnp.float32
    o = o_ref[0].astype(f32)                  # (6, N)  rows 0:3 head1, 3:6 head2
    gt = gt_ref[0].astype(f32)                # (N, 3)  gt, point-major (no XLA transpose)

    inv_eps = 1.0 / float(eps)                # compile-time constants
    inv_n = 1.0 / float(n)
    log_n = math.log(float(n))
    floor = 1e-30

    ones31 = jnp.ones((3, 1), f32)
    ones13 = jnp.ones((1, 3), f32)

    # Shared gt term: ||y_j||^2 as a lane-dense row.
    y2 = lax.dot_general(ones13, gt * gt, (((1,), (1,)), ((), ())),
                         preferred_element_type=f32)               # (1, N)

    def scaled_cost(xT):                      # xT: (3, N) -> c = cost/eps (N, N)
        x2 = lax.dot_general(xT * xT, ones31, (((0,), (0,)), ((), ())),
                             preferred_element_type=f32)           # (N, 1)
        xy = lax.dot_general(xT, gt, (((0,), (1,)), ((), ())),
                             preferred_element_type=f32)           # (N, N)
        return jnp.maximum(x2 + y2 - 2.0 * xy, 0.0) * inv_eps

    c1 = scaled_cost(o[0:3])
    c2 = scaled_cost(o[3:6])

    def lse(m, axis):
        mx = jnp.max(m, axis=axis, keepdims=True)
        return mx + jnp.log(jnp.sum(jnp.exp(m - mx), axis=axis, keepdims=True))

    def logdom_iter(st, c):                   # exact log-domain Sinkhorn iteration
        fh, gh = st
        gh = -log_n - lse(fh - c, axis=0)                          # (1, N)
        fh = -log_n - lse(gh - c, axis=1)                          # (N, 1)
        return fh, gh

    def scale_iter(st, K):                    # plain scaling iteration (matvecs + recip)
        u, v = st                                                  # (N,1), (1,N)
        cs = lax.dot_general(u, K, (((0,), (0,)), ((), ())),
                             preferred_element_type=f32)           # (1, N) col sums
        v = inv_n * pl.reciprocal(jnp.maximum(cs, floor), approx=True)
        rs = lax.dot_general(K, v, (((1,), (1,)), ((), ())),
                             preferred_element_type=f32)           # (N, 1) row sums
        u = inv_n * pl.reciprocal(jnp.maximum(rs, floor), approx=True)
        return u, v

    # Window schedule (compile-time): each window = 1 exact LSE iteration
    # (absorption / stabilization) + (w-1) cheap scaling iterations.
    iters = int(iters)
    W = max(1, min(int(window), iters)) if iters > 0 else 1
    n_full, rem = divmod(iters, W)
    sizes = [W] * n_full + ([rem] if rem else [])

    z_col = jnp.zeros((n, 1), f32)
    z_row = jnp.zeros((1, n), f32)
    o_col = jnp.ones((n, 1), f32)
    o_row = jnp.ones((1, n), f32)

    st1 = (z_col, z_row)                      # (fh, gh) absorbed scaled potentials
    st2 = (z_col, z_row)

    for w in sizes:
        st1 = logdom_iter(st1, c1)
        st2 = logdom_iter(st2, c2)
        # TODO(synk): on v6e/v7x K could be held in bf16 to halve the N^2 footprint.
        K1 = jnp.exp(st1[0] + st1[1] - c1)
        K2 = jnp.exp(st2[0] + st2[1] - c2)

        def body(_, carry, K1=K1, K2=K2):
            s1, s2 = carry
            return scale_iter(s1, K1), scale_iter(s2, K2)

        (u1, v1), (u2, v2) = lax.fori_loop(
            0, w - 1, body, ((o_col, o_row), (o_col, o_row)), unroll=True)

        st1 = (st1[0] + jnp.log(u1), st1[1] + jnp.log(v1))
        st2 = (st2[0] + jnp.log(u2), st2[1] + jnp.log(v2))

    def readout(gh, c):
        # Fused row-softmax + expected matched distance: w never materializes,
        # dist recovered as eps * sum(w * c) (cost itself is never stored).
        logits = gh - c
        mx = jnp.max(logits, axis=1, keepdims=True)
        e = jnp.exp(logits - mx)
        num = jnp.sum(e * c, axis=1, keepdims=True)                # (N, 1)
        den = jnp.sum(e, axis=1, keepdims=True)                    # (N, 1)
        dist = jnp.maximum(float(eps) * num * pl.reciprocal(den, approx=True), 0.0)
        return jnp.mean(jnp.sqrt(dist), axis=0, keepdims=True)     # (1, 1)

    emd1_ref[0] = readout(st1[1], c1)
    emd2_ref[0] = readout(st2[1], c2)

    # TODO(synk): MSN's expansion penalty is an MST-based term inside the
    # (externally supplied) model; mean squared distance to the cloud centroid
    # is used as a simple per-cloud surrogate.
    o1 = o[0:3]
    cen = jnp.mean(o1, axis=1, keepdims=True)                      # (3, 1)
    d2 = jnp.sum((o1 - cen) ** 2, axis=0, keepdims=True)           # (1, N)
    pen_ref[0] = jnp.mean(d2, axis=1, keepdims=True)               # (1, 1)


# ----------------------------------------------------------------------------
# Wrappers
# ----------------------------------------------------------------------------
def pack_params(params):
    """Pack the 8 tiny head weights into 4 arrays (one fused 2-head MLP)."""
    H = params["w1a"].shape[1]
    w1t = jnp.concatenate([params["w1a"].T, params["w1b"].T], axis=0)       # (2H, 3)
    b1 = jnp.concatenate([params["b1a"], params["b1b"]], axis=1).T          # (2H, 1)
    z = jnp.zeros((3, H), jnp.float32)
    w2t = jnp.concatenate(
        [jnp.concatenate([params["w2a"].T, z], axis=1),
         jnp.concatenate([z, params["w2b"].T], axis=1)], axis=0)            # (6, 2H)
    b2 = jnp.concatenate([params["b2a"], params["b2b"]], axis=1).T          # (6, 1)
    return w1t, b1, w2t, b2


def pointnet_heads(x_b3n, packed):
    """x_b3n: (B, 3, N) channels-first. Returns a (B, 6, N) slab [o1; o2]."""
    B, C, N = x_b3n.shape
    w1t, b1, w2t, b2 = packed
    H2 = w1t.shape[0]
    return pl.pallas_call(
        _pointnet_kernel,
        out_shape=jax.ShapeDtypeStruct((B, 6, N), jnp.float32),
        grid_spec=pl.GridSpec(
            grid=(B,),
            in_specs=[pl.BlockSpec((1, C, N), lambda b: (b, 0, 0)),
                      pl.BlockSpec((H2, C), lambda b: (0, 0)),
                      pl.BlockSpec((H2, 1), lambda b: (0, 0)),
                      pl.BlockSpec((6, H2), lambda b: (0, 0)),
                      pl.BlockSpec((6, 1), lambda b: (0, 0))],
            out_specs=pl.BlockSpec((1, 6, N), lambda b: (b, 0, 0))),
        compiler_params=pltpu.CompilerParams(
            dimension_semantics=("parallel",)),
    )(x_b3n, w1t, b1, w2t, b2)


def emd_and_penalty(o_b6n, gt_bn3, eps, iters, window=10):
    """o_b6n: (B, 6, N) channels-first heads; gt_bn3: (B, N, 3)."""
    B, _, N = o_b6n.shape
    assert gt_bn3.shape == (B, N, 3), "EMD assumes equal point counts"
    kernel = functools.partial(_emd_pen_kernel, iters=int(iters), n=int(N),
                               eps=float(eps), window=int(window))

    # Rough dense-cost VMEM need (c, K, exp-transient per head, f32).
    need = 6 * 4 * N * N
    vmem_limit = None
    if need > (28 << 20):
        # TODO(synk): for N >~ 2K, tile the gt axis with an online logsumexp
        # (mandatory on v7x's 64 MiB VMEM); dense form + raised limit kept here.
        vmem_limit = min(int(need * 1.5) + (8 << 20), 100 << 20)

    emd1, emd2, pen = pl.pallas_call(
        kernel,
        out_shape=(jax.ShapeDtypeStruct((B, 1, 1), jnp.float32),
                   jax.ShapeDtypeStruct((B, 1, 1), jnp.float32),
                   jax.ShapeDtypeStruct((B, 1, 1), jnp.float32)),
        grid_spec=pl.GridSpec(
            grid=(B,),
            in_specs=[pl.BlockSpec((1, 6, N), lambda b: (b, 0, 0)),
                      pl.BlockSpec((1, N, 3), lambda b: (b, 0, 0))],
            out_specs=(pl.BlockSpec((1, 1, 1), lambda b: (b, 0, 0)),
                       pl.BlockSpec((1, 1, 1), lambda b: (b, 0, 0)),
                       pl.BlockSpec((1, 1, 1), lambda b: (b, 0, 0)))),
        compiler_params=pltpu.CompilerParams(
            dimension_semantics=("parallel",),
            vmem_limit_bytes=vmem_limit),
    )(o_b6n, gt_bn3)
    return emd1[:, 0, 0], emd2[:, 0, 0], pen[:, 0, 0]


def full_model_forward(params, inputs, gt, eps, iters):
    """Mirrors FullModel.forward(inputs, gt, eps, iters)."""
    x = inputs.astype(jnp.float32)                                 # (B, 3, N) torch NCW
    o_b6n = pointnet_heads(x, pack_params(params))                 # (B, 6, N)
    gt3 = gt[:, :, :3].astype(jnp.float32)                         # (B, N, 3)

    emd1, emd2, pen = emd_and_penalty(o_b6n, gt3, eps, iters)      # (B,) each

    out1 = jnp.transpose(o_b6n[:, 0:3, :], (0, 2, 1))              # (B, N, 3)
    out2 = jnp.transpose(o_b6n[:, 3:6, :], (0, 2, 1))              # (B, N, 3)
    expansion_penalty = jnp.mean(pen)                              # scalar
    return out1, out2, emd1, emd2, expansion_penalty


def init_params(key, cin=3, hidden=32):
    ks = jax.random.split(key, 8)
    s = 0.5

    def w(k, shape):
        return s * jax.random.normal(k, shape, jnp.float32)

    return {
        "w1a": w(ks[0], (cin, hidden)), "b1a": w(ks[1], (1, hidden)),
        "w2a": w(ks[2], (hidden, 3)),   "b2a": w(ks[3], (1, 3)),
        "w1b": w(ks[4], (cin, hidden)), "b1b": w(ks[5], (1, hidden)),
        "w2b": w(ks[6], (hidden, 3)),   "b2b": w(ks[7], (1, 3)),
    }


if __name__ == "__main__":
    key = jax.random.PRNGKey(0)
    k_in, k_gt, k_par = jax.random.split(key, 3)

    B, N, H, C_GT = 2, 16, 32, 6
    inputs = jax.random.normal(k_in, (B, 3, N), jnp.float32)       # NCW like torch
    gt = jax.random.normal(k_gt, (B, N, C_GT), jnp.float32)        # extra channels
    params = init_params(k_par, cin=3, hidden=H)

    eps, iters = 0.005, 50
    out1, out2, emd1, emd2, pen = full_model_forward(params, inputs, gt, eps, iters)
    jax.block_until_ready((out1, out2, emd1, emd2, pen))

    assert out1.shape == (B, N, 3) and out1.dtype == jnp.float32
    assert out2.shape == (B, N, 3) and out2.dtype == jnp.float32
    assert emd1.shape == (B,) and emd2.shape == (B,)
    assert pen.shape == ()
    assert bool(jnp.all(jnp.isfinite(emd1))) and bool(jnp.all(jnp.isfinite(emd2)))
    print("KERNEL_OK")
</pallas_src>

<mosaic_0001>
module attributes {stable_mosaic.version = 11 : i64} {
  func.func @_pointnet_kernel(%arg0: i32, %arg1: memref<1x3x16xf32, #tpu.memory_space<vmem>>, %arg2: memref<64x3xf32, #tpu.memory_space<vmem>>, %arg3: memref<64x1xf32, #tpu.memory_space<vmem>>, %arg4: memref<6x64xf32, #tpu.memory_space<vmem>>, %arg5: memref<6x1xf32, #tpu.memory_space<vmem>>, %arg6: memref<1x6x16xf32, #tpu.memory_space<vmem>>) attributes {dimension_semantics = [#tpu.dimension_semantics<parallel>], iteration_bounds = array<i64: 2>, scalar_prefetch = 0 : i64, scratch_operands = 0 : i64, tpu.core_type = #tpu.core_type<tc>, window_params = [{transform_indices = @transform_0, window_bounds = array<i64: 1, 3, 16>}, {pipeline_mode = #tpu.pipeline_mode<synchronous>, transform_indices = @transform_1, window_bounds = array<i64: 64, 3>}, {pipeline_mode = #tpu.pipeline_mode<synchronous>, transform_indices = @transform_2, window_bounds = array<i64: 64, 1>}, {pipeline_mode = #tpu.pipeline_mode<synchronous>, transform_indices = @transform_3, window_bounds = array<i64: 6, 64>}, {pipeline_mode = #tpu.pipeline_mode<synchronous>, transform_indices = @transform_4, window_bounds = array<i64: 6, 1>}, {transform_indices = @transform_5, window_bounds = array<i64: 1, 6, 16>}]} {
    %c0 = arith.constant 0 : index
    %c0_0 = arith.constant 0 : index
    %c0_1 = arith.constant 0 : index
    %0 = vector.load %arg1[%c0, %c0_0, %c0_1] : memref<1x3x16xf32, #tpu.memory_space<vmem>>, vector<1x3x16xf32>
    %1 = vector.shape_cast %0 : vector<1x3x16xf32> to vector<3x16xf32>
    %c0_2 = arith.constant 0 : index
    %c0_3 = arith.constant 0 : index
    %2 = vector.load %arg2[%c0_2, %c0_3] : memref<64x3xf32, #tpu.memory_space<vmem>>, vector<64x3xf32>
    %cst = arith.constant dense<0.000000e+00> : vector<64x16xf32>
    %3 = tpu.matmul %2, %1, %cst {dimension_numbers = #tpu.dot_dimension_numbers<[1], [0], [0], [1], [0, 0, 1, 1], [], []>} : vector<64x3xf32>, vector<3x16xf32>, vector<64x16xf32> -> vector<64x16xf32>
    %c0_4 = arith.constant 0 : index
    %c0_5 = arith.constant 0 : index
    %4 = vector.load %arg3[%c0_4, %c0_5] : memref<64x1xf32, #tpu.memory_space<vmem>>, vector<64x1xf32>
    %5 = vector.broadcast %4 : vector<64x1xf32> to vector<64x16xf32>
    %6 = arith.addf %3, %5 : vector<64x16xf32>
    %cst_6 = arith.constant 0.000000e+00 : f32
    %7 = vector.broadcast %cst_6 : f32 to vector<64x16xf32>
    %8 = arith.maximumf %6, %7 : vector<64x16xf32>
    %c0_7 = arith.constant 0 : index
    %c0_8 = arith.constant 0 : index
    %9 = vector.load %arg4[%c0_7, %c0_8] : memref<6x64xf32, #tpu.memory_space<vmem>>, vector<6x64xf32>
    %cst_9 = arith.constant dense<0.000000e+00> : vector<6x16xf32>
    %10 = tpu.matmul %9, %8, %cst_9 {dimension_numbers = #tpu.dot_dimension_numbers<[1], [0], [0], [1], [0, 0, 1, 1], [], []>} : vector<6x64xf32>, vector<64x16xf32>, vector<6x16xf32> -> vector<6x16xf32>
    %c0_10 = arith.constant 0 : index
    %c0_11 = arith.constant 0 : index
    %11 = vector.load %arg5[%c0_10, %c0_11] : memref<6x1xf32, #tpu.memory_space<vmem>>, vector<6x1xf32>
    %12 = vector.broadcast %11 : vector<6x1xf32> to vector<6x16xf32>
    %13 = arith.addf %10, %12 : vector<6x16xf32>
    %14 = math.tanh %13 : vector<6x16xf32>
    %c0_12 = arith.constant 0 : index
    %c0_13 = arith.constant 0 : index
    %c0_14 = arith.constant 0 : index
    %15 = vector.load %arg6[%c0_12, %c0_13, %c0_14] : memref<1x6x16xf32, #tpu.memory_space<vmem>>, vector<1x6x16xf32>
    %16 = vector.shape_cast %15 : vector<1x6x16xf32> to vector<6x16xf32>
    %17 = vector.shape_cast %14 : vector<6x16xf32> to vector<1x6x16xf32>
    tpu.vector_store %arg6[%c0_12, %c0_13, %c0_14], %17 {strides = array<i32>} : memref<1x6x16xf32, #tpu.memory_space<vmem>>, vector<1x6x16xf32>,
    return
  }
  func.func @transform_0(%arg0: i32) -> (i32, i32, i32) {
    %c0_i32 = arith.constant 0 : i32
    %c0_i32_0 = arith.constant 0 : i32
    %c0_i32_1 = arith.constant 0 : i32
    return %arg0, %c0_i32, %c0_i32_0 : i32, i32, i32
  }
  func.func @transform_1(%arg0: i32) -> (i32, i32) {
    %c0_i32 = arith.constant 0 : i32
    %c0_i32_0 = arith.constant 0 : i32
    %c0_i32_1 = arith.constant 0 : i32
    return %c0_i32, %c0_i32_0 : i32, i32
  }
  func.func @transform_2(%arg0: i32) -> (i32, i32) {
    %c0_i32 = arith.constant 0 : i32
    %c0_i32_0 = arith.constant 0 : i32
    %c0_i32_1 = arith.constant 0 : i32
    return %c0_i32, %c0_i32_0 : i32, i32
  }
  func.func @transform_3(%arg0: i32) -> (i32, i32) {
    %c0_i32 = arith.constant 0 : i32
    %c0_i32_0 = arith.constant 0 : i32
    %c0_i32_1 = arith.constant 0 : i32
    return %c0_i32, %c0_i32_0 : i32, i32
  }
  func.func @transform_4(%arg0: i32) -> (i32, i32) {
    %c0_i32 = arith.constant 0 : i32
    %c0_i32_0 = arith.constant 0 : i32
    %c0_i32_1 = arith.constant 0 : i32
    return %c0_i32, %c0_i32_0 : i32, i32
  }
  func.func @transform_5(%arg0: i32) -> (i32, i32, i32) {
    %c0_i32 = arith.constant 0 : i32
    %c0_i32_0 = arith.constant 0 : i32
    %c0_i32_1 = arith.constant 0 : i32
    return %arg0, %c0_i32, %c0_i32_0 : i32, i32, i32
  }
}

</mosaic_0001>

<llo_original>
// kernel: tpu_custom_call.1
$region0: #{tpu_custom_call.1}
  #allocation0 [shape = 'u32[]', space=smem, size = 0x4, offset = 0x4, fixed_abs, tag = 'smem constant byte address 0x4 - core index']
  #allocation1 [shape = 'u32[144,128]{1,0:T(1,128)}', space=vmem, size = 0x12000, scoped, tag = 'internal scratch']
  %s0 = inlined_call_operand.vmem [shape: f32[2,3,16], index: 0, kind: input, shape index: {}]
  %s1 = inlined_call_operand.vmem [shape: f32[64,3], index: 1, kind: input, shape index: {}]
  %s2 = inlined_call_operand.vmem [shape: f32[64,1], index: 2, kind: input, shape index: {}]
  %s3 = inlined_call_operand.vmem [shape: f32[6,64], index: 3, kind: input, shape index: {}]
  %s4 = inlined_call_operand.vmem [shape: f32[6,1], index: 4, kind: input, shape index: {}]
  %s5 = inlined_call_operand.vmem [shape: f32[2,6,16], index: 5, kind: output, shape index: {}]
  %s6 = sld [smem:[#allocation0]]
  $region53: #{tpu_custom_call.1} parent=0
    _
  %s8 = ssub.s32 1, %s6
  %s9 = scalar_select 0, %s8, %s6
  loop: start=0, step=1, limit=4
  $region2: #{tpu_custom_call.1} parent=0 // loop_pre_header
    _
  $region3: #{tpu_custom_call.1} parent=0 // loop_header
    %s11 = sphi 0, %s15
    %p12 = scmp.ge.s32.totalorder %s11, 4
    %s21 = sphi 0, %s23
    %s24 = sphi 0, %s21
    %s25 = sphi 0, %s24
    %s41 = sphi 0, %s25
    %s45 = sphi 0, %s45
    %s47 = sphi 0, %s45
    %s48 = sphi 0, %s47
    %s62 = sphi 0, %s48
    %s66 = sphi 0, %s66
    %s68 = sphi 0, %s66
    %s69 = sphi 0, %s68
    %s83 = sphi 0, %s69
    %s87 = sphi 0, %s87
    %s89 = sphi 0, %s87
    %s90 = sphi 0, %s89
    %s104 = sphi 0, %s90
    %s108 = sphi 0, %s108
    %s110 = sphi 0, %s108
    %s111 = sphi 0, %s110
    %s125 = sphi 0, %s111
    %s131 = sphi 0, %s133
    %s134 = sphi 0, %s131
    %s135 = sphi 0, %s134
    %s151 = sphi 0, %s135
  $region4: #{tpu_custom_call.1} parent=0 // loop_header_branch
    %14 = sbr.rel (%p12) target = $region8
  $region5: #{tpu_custom_call.1} parent=0 // loop_body
    %s16 = ssub.s32 %s11, 1
    %s17 = ssub.s32 %s11, 2
    %s18 = sadd.s32 %s11, 1
    %s19 = ssub.s32 %s11, %s18
    %p20 = scmp.eq.s32.totalorder %s19, 0
    %s22 = sadd.s32 %s21, 1
    %s23 = scalar_select %p20, %s21, %s22
    %p26 = pneg %p20
    %p27 = scmp.eq.s32.totalorder %s11, 1
    %p28 = por %p26, %p27
    %p29 = scmp.ne.s32.totalorder %s21, %s24
    %p30 = scmp.eq.s32.totalorder %s11, 0
    %p31 = por %p29, %p30
    %p32 = scmp.ne.s32.totalorder %s21, %s24
    %p33 = scmp.eq.s32.totalorder %s16, 1
    %p34 = por %p32, %p33
    %p35 = scmp.ne.s32.totalorder %s24, %s25
    %p36 = scmp.eq.s32.totalorder %s16, 0
    %p37 = por %p35, %p36
    %p38 = scmp.ne.s32.totalorder %s24, %s25
    %p39 = scmp.eq.s32.totalorder %s17, 1
    %p40 = por %p38, %p39
    %p42 = scmp.ne.s32.totalorder %s25, %s41
    %p43 = scmp.eq.s32.totalorder %s17, 0
    %p44 = por %p42, %p43
    %s46 = sadd.s32 %s45, 1
    %p49 = scmp.eq.s32.totalorder %s11, 1
    %p50 = scmp.ne.s32.totalorder %s45, %s47
    %p51 = scmp.eq.s32.totalorder %s11, 0
    %p52 = por %p50, %p51
    %p53 = scmp.ne.s32.totalorder %s45, %s47
    %p54 = scmp.eq.s32.totalorder %s16, 1
    %p55 = por %p53, %p54
    %p56 = scmp.ne.s32.totalorder %s47, %s48
    %p57 = scmp.eq.s32.totalorder %s16, 0
    %p58 = por %p56, %p57
    %p59 = scmp.ne.s32.totalorder %s47, %s48
    %p60 = scmp.eq.s32.totalorder %s17, 1
    %p61 = por %p59, %p60
    %p63 = scmp.ne.s32.totalorder %s48, %s62
    %p64 = scmp.eq.s32.totalorder %s17, 0
    %p65 = por %p63, %p64
    %s67 = sadd.s32 %s66, 1
    %p70 = scmp.eq.s32.totalorder %s11, 1
    %p71 = scmp.ne.s32.totalorder %s66, %s68
    %p72 = scmp.eq.s32.totalorder %s11, 0
    %p73 = por %p71, %p72
    %p74 = scmp.ne.s32.totalorder %s66, %s68
    %p75 = scmp.eq.s32.totalorder %s16, 1
    %p76 = por %p74, %p75
    %p77 = scmp.ne.s32.totalorder %s68, %s69
    %p78 = scmp.eq.s32.totalorder %s16, 0
    %p79 = por %p77, %p78
    %p80 = scmp.ne.s32.totalorder %s68, %s69
    %p81 = scmp.eq.s32.totalorder %s17, 1
    %p82 = por %p80, %p81
    %p84 = scmp.ne.s32.totalorder %s69, %s83
    %p85 = scmp.eq.s32.totalorder %s17, 0
    %p86 = por %p84, %p85
    %s88 = sadd.s32 %s87, 1
    %p91 = scmp.eq.s32.totalorder %s11, 1
    %p92 = scmp.ne.s32.totalorder %s87, %s89
    %p93 = scmp.eq.s32.totalorder %s11, 0
    %p94 = por %p92, %p93
    %p95 = scmp.ne.s32.totalorder %s87, %s89
    %p96 = scmp.eq.s32.totalorder %s16, 1
    %p97 = por %p95, %p96
    %p98 = scmp.ne.s32.totalorder %s89, %s90
    %p99 = scmp.eq.s32.totalorder %s16, 0
    %p100 = por %p98, %p99
    %p101 = scmp.ne.s32.totalorder %s89, %s90
    %p102 = scmp.eq.s32.totalorder %s17, 1
    %p103 = por %p101, %p102
    %p105 = scmp.ne.s32.totalorder %s90, %s104
    %p106 = scmp.eq.s32.totalorder %s17, 0
    %p107 = por %p105, %p106
    %s109 = sadd.s32 %s108, 1
    %p112 = scmp.eq.s32.totalorder %s11, 1
    %p113 = scmp.ne.s32.totalorder %s108, %s110
    %p114 = scmp.eq.s32.totalorder %s11, 0
    %p115 = por %p113, %p114
    %p116 = scmp.ne.s32.totalorder %s108, %s110
    %p117 = scmp.eq.s32.totalorder %s16, 1
    %p118 = por %p116, %p117
    %p119 = scmp.ne.s32.totalorder %s110, %s111
    %p120 = scmp.eq.s32.totalorder %s16, 0
    %p121 = por %p119, %p120
    %p122 = scmp.ne.s32.totalorder %s110, %s111
    %p123 = scmp.eq.s32.totalorder %s17, 1
    %p124 = por %p122, %p123
    %p126 = scmp.ne.s32.totalorder %s111, %s125
    %p127 = scmp.eq.s32.totalorder %s17, 0
    %p128 = por %p126, %p127
    %s129 = ssub.s32 %s11, %s18
    %p130 = scmp.eq.s32.totalorder %s129, 0
    %s132 = sadd.s32 %s131, 1
    %s133 = scalar_select %p130, %s131, %s132
    %p136 = pneg %p130
    %p137 = scmp.eq.s32.totalorder %s11, 1
    %p138 = por %p136, %p137
    %p139 = scmp.ne.s32.totalorder %s131, %s134
    %p140 = scmp.eq.s32.totalorder %s11, 0
    %p141 = por %p139, %p140
    %p142 = scmp.ne.s32.totalorder %s131, %s134
    %p143 = scmp.eq.s32.totalorder %s16, 1
    %p144 = por %p142, %p143
    %p145 = scmp.ne.s32.totalorder %s134, %s135
    %p146 = scmp.eq.s32.totalorder %s16, 0
    %p147 = por %p145, %p146
    %p148 = scmp.ne.s32.totalorder %s134, %s135
    %p149 = scmp.eq.s32.totalorder %s17, 1
    %p150 = por %p148, %p149
    %p152 = scmp.ne.s32.totalorder %s135, %s151
    %p153 = scmp.eq.s32.totalorder %s17, 0
    %p154 = por %p152, %p153
    %p155 = scmp.le.s32.totalorder 1, %s11
    %p156 = scmp.lt.s32.totalorder %s11, 3
    %p157 = pnand %p155, %p156
    %p158 = pneg %p157
    // Predicated region
    $region9: #{tpu_custom_call.1} parent=5 // pred_check
      _
    $region10: #{tpu_custom_call.1} parent=5 // pred_check_branch
      %160 = sbr.rel (%p157) target = $region12
    $region11: #{tpu_custom_call.1} parent=5 // pred_region
      %s161 = ssub.s32 %s11, 1
      // Predicated region
      $region13: #{tpu_custom_call.1} parent=11 // pred_check
        %p162 = pneg %p58
      $region14: #{tpu_custom_call.1} parent=11 // pred_check_branch
        %164 = sbr.rel (%p162) target = $region16
      $region15: #{tpu_custom_call.1} parent=11 // pred_region
        _
      $region16: #{tpu_custom_call.1} parent=11 // pred_fallthru
        _
      // Predicated region
      $region17: #{tpu_custom_call.1} parent=11 // pred_check
        %p165 = pneg %p79
      $region18: #{tpu_custom_call.1} parent=11 // pred_check_branch
        %167 = sbr.rel (%p165) target = $region20
      $region19: #{tpu_custom_call.1} parent=11 // pred_region
        _
      $region20: #{tpu_custom_call.1} parent=11 // pred_fallthru
        _
      // Predicated region
      $region21: #{tpu_custom_call.1} parent=11 // pred_check
        %p168 = pneg %p100
      $region22: #{tpu_custom_call.1} parent=11 // pred_check_branch
        %170 = sbr.rel (%p168) target = $region24
      $region23: #{tpu_custom_call.1} parent=11 // pred_region
        _
      $region24: #{tpu_custom_call.1} parent=11 // pred_fallthru
        _
      // Predicated region
      $region25: #{tpu_custom_call.1} parent=11 // pred_check
        %p171 = pneg %p121
      $region26: #{tpu_custom_call.1} parent=11 // pred_check_branch
        %173 = sbr.rel (%p171) target = $region28
      $region27: #{tpu_custom_call.1} parent=11 // pred_region
        _
      $region28: #{tpu_custom_call.1} parent=11 // pred_fallthru
        _
    $region12: #{tpu_custom_call.1} parent=5 // pred_fallthru
      _
    %p174 = scmp.lt.s32.totalorder %s11, 2
    // Predicated region
    $region29: #{tpu_custom_call.1} parent=5 // pred_check
      %p175 = pneg %p174
    $region30: #{tpu_custom_call.1} parent=5 // pred_check_branch
      %177 = sbr.rel (%p175) target = $region32
    $region31: #{tpu_custom_call.1} parent=5 // pred_region
      // Predicated region
      $region33: #{tpu_custom_call.1} parent=31 // pred_check
        %p178 = pneg %p31
      $region34: #{tpu_custom_call.1} parent=31 // pred_check_branch
        %180 = sbr.rel (%p178) target = $region36
      $region35: #{tpu_custom_call.1} parent=31 // pred_region
        %p181 = scmp.lt.s32.totalorder %s11, 1
        %s182 = scalar_select %p181, %s11, 1
        %s183 = smul.addr %s182, 4
        %s184 = scalar_lea.vmem %s0, %s183
      $region36: #{tpu_custom_call.1} parent=31 // pred_fallthru
        _
    $region32: #{tpu_custom_call.1} parent=5 // pred_fallthru
      _
    %p185 = scmp.le.s32.totalorder 1, %s11
    %p186 = scmp.lt.s32.totalorder %s11, 3
    %p187 = pnand %p185, %p186
    %p188 = pneg %p187
    // Predicated region
    $region37: #{tpu_custom_call.1} parent=5 // pred_check
      _
    $region38: #{tpu_custom_call.1} parent=5 // pred_check_branch
      %190 = sbr.rel (%p187) target = $region40
    $region39: #{tpu_custom_call.1} parent=5 // pred_region
      %s191 = ssub.s32 %s11, 1
      %p192 = scmp.lt.s32.totalorder %s16, 1
      %s193 = scalar_select %p192, %s16, 1
      %s194 = smul.addr %s193, 4
      %s195 = scalar_lea.vmem %s0, %s194
      %p196 = pneg %p37
      %p197 = pneg %p34
      %p198 = pneg %p58
      %p199 = pneg %p55
      %p200 = pneg %p79
      %p201 = pneg %p76
      %p202 = pneg %p100
      %p203 = pneg %p97
      %p204 = pneg %p121
      %p205 = pneg %p118
      %p206 = pneg %p147
      %p207 = pneg %p144
      %p208 = scmp.lt.s32.totalorder %s16, 1
      %s209 = scalar_select %p208, %s16, 1
      %s210 = smul.addr %s209, 8
      %s211 = scalar_lea.vmem %s5, %s210
      %p212 = scmp.lt.s32.totalorder %s16, 1
      %s213 = scalar_select %p212, %s16, 1
      %s214 = smul.addr %s213, 4
      %s215 = scalar_lea.vmem %s0, %s214
      %p216 = scmp.lt.s32.totalorder %s16, 1
      %s217 = scalar_select %p216, %s16, 1
      %s218 = smul.addr %s217, 8
      %s219 = scalar_lea.vmem %s5, %s218
      %v220 = vld [vmem:[%s215] sm:$0x7]
      %v221 = vld [vmem:[%s1] sm:$0xff]
      %v222 = vld [vmem:[%s1 + $0x8] sm:$0xff]
      %v223 = vld [vmem:[%s1 + $0x10] sm:$0xff]
      %v224 = vld [vmem:[%s1 + $0x18] sm:$0xff]
      %v225 = vld [vmem:[%s1 + $0x20] sm:$0xff]
      %v226 = vld [vmem:[%s1 + $0x28] sm:$0xff]
      %v227 = vld [vmem:[%s1 + $0x30] sm:$0xff]
      %v228 = vld [vmem:[%s1 + $0x38] sm:$0xff]
      %v229 = vld [vmem:[%s2] sm:$0xff]
      %v230 = vld [vmem:[%s2 + $0x8] sm:$0xff]
      %v231 = vld [vmem:[%s2 + $0x10] sm:$0xff]
      %v232 = vld [vmem:[%s2 + $0x18] sm:$0xff]
      %v233 = vld [vmem:[%s2 + $0x20] sm:$0xff]
      %v234 = vld [vmem:[%s2 + $0x28] sm:$0xff]
      %v235 = vld [vmem:[%s2 + $0x30] sm:$0xff]
      %v236 = vld [vmem:[%s2 + $0x38] sm:$0xff]
      %238 = vset.pattern.permute.xlu0 0
      %239 = vperm.xlu0 %238, %v229
      %v240 = vpop.permute.xlu0 %239
      %243 = vset.pattern.permute.xlu0 0
      %244 = vperm.xlu0 %243, %v230
      %v245 = vpop.permute.xlu0 %244
      %248 = vset.pattern.permute.xlu0 0
      %249 = vperm.xlu0 %248, %v231
      %v250 = vpop.permute.xlu0 %249
      %253 = vset.pattern.permute.xlu0 0
      %254 = vperm.xlu0 %253, %v232
      %v255 = vpop.permute.xlu0 %254
      %258 = vset.pattern.permute.xlu0 0
      %259 = vperm.xlu0 %258, %v233
      %v260 = vpop.permute.xlu0 %259
      %263 = vset.pattern.permute.xlu0 0
      %264 = vperm.xlu0 %263, %v234
      %v265 = vpop.permute.xlu0 %264
      %268 = vset.pattern.permute.xlu0 0
      %269 = vperm.xlu0 %268, %v235
      %v270 = vpop.permute.xlu0 %269
      %273 = vset.pattern.permute.xlu0 0
      %274 = vperm.xlu0 %273, %v236
      %v275 = vpop.permute.xlu0 %274
      %vm277 = vcmask 23552
      %v279 = vsel %vm277, %v221, 0
      %v282 = vsel %vm277, %v222, 0
      %v285 = vsel %vm277, %v223, 0
      %v288 = vsel %vm277, %v224, 0
      %v291 = vsel %vm277, %v225, 0
      %v294 = vsel %vm277, %v226, 0
      %v297 = vsel %vm277, %v227, 0
      %v300 = vsel %vm277, %v228, 0
      %vm302 = vcmask 1042432
      %v304 = vsel %vm302, %v220, 0
      %306 = vmatprep.subr.mxu0 0.0
      %307 = vmatpush1.msra.mxu0 %v304
      %308 = vmatprep.subr.mxu0 0.0
      %309 = vmatpush1.msra.mxu0 0.0
      %310 = vmatprep.subr.mxu0 0.0
      %311 = vmatpush1.msra.mxu0 0.0
      %312 = vmatprep.subr.mxu0 0.0
      %313 = vmatpush1.msra.mxu0 0.0
      %314 = vmatprep.subr.mxu0 0.0
      %315 = vmatpush1.msra.mxu0 0.0
      %316 = vmatprep.subr.mxu0 0.0
      %317 = vmatpush1.msra.mxu0 0.0
      %318 = vmatprep.subr.mxu0 0.0
      %319 = vmatpush1.msra.mxu0 0.0
      %320 = vmatprep.subr.mxu0 0.0
      %321 = vmatpush1.msra.mxu0 0.0
      %322 = vmatprep.subr.mxu0 0.0
      %323 = vmatpush1.msra.mxu0 0.0
      %324 = vmatprep.subr.mxu0 0.0
      %325 = vmatpush1.msra.mxu0 0.0
      %326 = vmatprep.subr.mxu0 0.0
      %327 = vmatpush1.msra.mxu0 0.0
      %328 = vmatprep.subr.mxu0 0.0
      %329 = vmatpush1.msra.mxu0 0.0
      %330 = vmatprep.subr.mxu0 0.0
      %331 = vmatpush1.msra.mxu0 0.0
      %332 = vmatprep.subr.mxu0 0.0
      %333 = vmatpush1.msra.mxu0 0.0
      %334 = vmatprep.subr.mxu0 0.0
      %335 = vmatpush1.msra.mxu0 0.0
      %336 = vmatprep.subr.mxu0 0.0
      %337 = vmatpush1.msra.mxu0 0.0
      %338 = vmatprep.subr.mxu0 0.0
      %339 = vmatpush1.msra.mxu0 0.0
      %340 = vmatprep.subr.mxu0 0.0
      %341 = vmatpush1.msra.mxu0 0.0
      %342 = vmatprep.subr.mxu0 0.0
      %343 = vmatpush1.msra.mxu0 0.0
      %344 = vmatprep.subr.mxu0 0.0
      %345 = vmatpush1.msra.mxu0 0.0
      %346 = vmatprep.subr.mxu0 0.0
      %347 = vmatpush1.msra.mxu0 0.0
      %348 = vmatprep.subr.mxu0 0.0
      %349 = vmatpush1.msra.mxu0 0.0
      %350 = vmatprep.subr.mxu0 0.0
      %351 = vmatpush1.msra.mxu0 0.0
      %352 = vmatprep.subr.mxu0 0.0
      %353 = vmatpush1.msra.mxu0 0.0
      %354 = vmatprep.subr.mxu0 0.0
      %355 = vmatpush1.msra.mxu0 0.0
      %356 = vmatprep.subr.mxu0 0.0
      %357 = vmatpush1.msra.mxu0 0.0
      %358 = vmatprep.subr.mxu0 0.0
      %359 = vmatpush1.msra.mxu0 0.0
      %360 = vmatprep.subr.mxu0 0.0
      %361 = vmatpush1.msra.mxu0 0.0
      %362 = vmatprep.subr.mxu0 0.0
      %363 = vmatpush1.msra.mxu0 0.0
      %364 = vmatprep.subr.mxu0 0.0
      %365 = vmatpush1.msra.mxu0 0.0
      %366 = vmatprep.subr.mxu0 0.0
      %367 = vmatpush1.msra.mxu0 0.0
      %368 = vmatprep.subr.mxu0 0.0
      %369 = vmatpush1.msra.mxu0 0.0
      %370 = vmatprep.mubr.f32.mxu0 0.0
      %371 = vmatmul.mubr.f32.gmra.mrb[0].mxu0 %v279
      %v372 = vpop.f32.mrb[0].mxu0
      %v373 = vadd.f32 %v240, %v372
      %v374 = vpop.f32.mrb[0].mxu0
      %375 = vmatprep.mubr.f32.mxu0 0.0
      %376 = vmatmul.mubr.f32.gmra.mrb[0].mxu0 %v282
      %v377 = vpop.f32.mrb[0].mxu0
      %v378 = vadd.f32 %v245, %v377
      %v379 = vpop.f32.mrb[0].mxu0
      %380 = vmatprep.mubr.f32.mxu0 0.0
      %381 = vmatmul.mubr.f32.gmra.mrb[0].mxu0 %v285
      %v382 = vpop.f32.mrb[0].mxu0
      %v383 = vadd.f32 %v250, %v382
      %v384 = vpop.f32.mrb[0].mxu0
      %385 = vmatprep.mubr.f32.mxu0 0.0
      %386 = vmatmul.mubr.f32.gmra.mrb[0].mxu0 %v288
      %v387 = vpop.f32.mrb[0].mxu0
      %v388 = vadd.f32 %v255, %v387
      %v389 = vpop.f32.mrb[0].mxu0
      %390 = vmatprep.mubr.f32.mxu0 0.0
      %391 = vmatmul.mubr.f32.gmra.mrb[0].mxu0 %v291
      %v392 = vpop.f32.mrb[0].mxu0
      %v393 = vadd.f32 %v260, %v392
      %v394 = vpop.f32.mrb[0].mxu0
      %395 = vmatprep.mubr.f32.mxu0 0.0
      %396 = vmatmul.mubr.f32.gmra.mrb[0].mxu0 %v294
      %v397 = vpop.f32.mrb[0].mxu0
      %v398 = vadd.f32 %v265, %v397
      %v399 = vpop.f32.mrb[0].mxu0
      %400 = vmatprep.mubr.f32.mxu0 0.0
      %401 = vmatmul.mubr.f32.gmra.mrb[0].mxu0 %v297
      %v402 = vpop.f32.mrb[0].mxu0
      %v403 = vadd.f32 %v270, %v402
      %v404 = vpop.f32.mrb[0].mxu0
      %405 = vmatprep.mubr.f32.mxu0 0.0
      %406 = vmatmul.mubr.f32.gmra.mrb[0].mxu0 %v300
      %v407 = vpop.f32.mrb[0].mxu0
      %v408 = vadd.f32 %v275, %v407
      %v409 = vpop.f32.mrb[0].mxu0
      %410 = vdwg.mxu0
      %v411 = vmax.f32 %v373, 0.0
      %v412 = vmax.f32 %v378, 0.0
      %v413 = vmax.f32 %v383, 0.0
      %v414 = vmax.f32 %v388, 0.0
      %v415 = vmax.f32 %v393, 0.0
      %v416 = vmax.f32 %v398, 0.0
      %v417 = vmax.f32 %v403, 0.0
      %v418 = vmax.f32 %v408, 0.0
      %v419 = vld [vmem:[%s3] sm:$0x3f]
      %v420 = vld [vmem:[%s4] sm:$0x3f]
      %422 = vset.pattern.permute.xlu0 0
      %423 = vperm.xlu0 %422, %v420
      %v424 = vpop.permute.xlu0 %423
      %vm426 = vcmask 523264
      %v428 = vsel %vm426, %v419, 0
      %430 = vmatprep.subr.mxu0 0.0
      %431 = vmatpush1.msra.mxu0 %v411
      %432 = vmatprep.subr.mxu0 0.0
      %433 = vmatpush1.msra.mxu0 %v412
      %434 = vmatprep.subr.mxu0 0.0
      %435 = vmatpush1.msra.mxu0 %v413
      %436 = vmatprep.subr.mxu0 0.0
      %437 = vmatpush1.msra.mxu0 %v414
      %438 = vmatprep.subr.mxu0 0.0
      %439 = vmatpush1.msra.mxu0 %v415
      %440 = vmatprep.subr.mxu0 0.0
      %441 = vmatpush1.msra.mxu0 %v416
      %442 = vmatprep.subr.mxu0 0.0
      %443 = vmatpush1.msra.mxu0 %v417
      %444 = vmatprep.subr.mxu0 0.0
      %445 = vmatpush1.msra.mxu0 %v418
      %446 = vmatprep.subr.mxu0 0.0
      %447 = vmatpush1.msra.mxu0 0.0
      %448 = vmatprep.subr.mxu0 0.0
      %449 = vmatpush1.msra.mxu0 0.0
      %450 = vmatprep.subr.mxu0 0.0
      %451 = vmatpush1.msra.mxu0 0.0
      %452 = vmatprep.subr.mxu0 0.0
      %453 = vmatpush1.msra.mxu0 0.0
      %454 = vmatprep.subr.mxu0 0.0
      %455 = vmatpush1.msra.mxu0 0.0
      %456 = vmatprep.subr.mxu0 0.0
      %457 = vmatpush1.msra.mxu0 0.0
      %458 = vmatprep.subr.mxu0 0.0
      %459 = vmatpush1.msra.mxu0 0.0
      %460 = vmatprep.subr.mxu0 0.0
      %461 = vmatpush1.msra.mxu0 0.0
      %462 = vmatprep.subr.mxu0 0.0
      %463 = vmatpush1.msra.mxu0 0.0
      %464 = vmatprep.subr.mxu0 0.0
      %465 = vmatpush1.msra.mxu0 0.0
      %466 = vmatprep.subr.mxu0 0.0
      %467 = vmatpush1.msra.mxu0 0.0
      %468 = vmatprep.subr.mxu0 0.0
      %469 = vmatpush1.msra.mxu0 0.0
      %470 = vmatprep.subr.mxu0 0.0
      %471 = vmatpush1.msra.mxu0 0.0
      %472 = vmatprep.subr.mxu0 0.0
      %473 = vmatpush1.msra.mxu0 0.0
      %474 = vmatprep.subr.mxu0 0.0
      %475 = vmatpush1.msra.mxu0 0.0
      %476 = vmatprep.subr.mxu0 0.0
      %477 = vmatpush1.msra.mxu0 0.0
      %478 = vmatprep.subr.mxu0 0.0
      %479 = vmatpush1.msra.mxu0 0.0
      %480 = vmatprep.subr.mxu0 0.0
      %481 = vmatpush1.msra.mxu0 0.0
      %482 = vmatprep.subr.mxu0 0.0
      %483 = vmatpush1.msra.mxu0 0.0
      %484 = vmatprep.subr.mxu0 0.0
      %485 = vmatpush1.msra.mxu0 0.0
      %486 = vmatprep.subr.mxu0 0.0
      %487 = vmatpush1.msra.mxu0 0.0
      %488 = vmatprep.subr.mxu0 0.0
      %489 = vmatpush1.msra.mxu0 0.0
      %490 = vmatprep.subr.mxu0 0.0
      %491 = vmatpush1.msra.mxu0 0.0
      %492 = vmatprep.subr.mxu0 0.0
      %493 = vmatpush1.msra.mxu0 0.0
      %494 = vmatprep.mubr.f32.mxu0 0.0
      %495 = vmatmul.mubr.f32.gmra.mrb[0].mxu0 %v428
      %v496 = vpop.f32.mrb[0].mxu0
      %v497 = vadd.f32 %v424, %v496
      %v498 = vpop.f32.mrb[0].mxu0
      %499 = vdwg.mxu0
      %v500 = vtanh.pop %v497
      %vm501 = vcmask 128000
      %502 = vst.msk [vmem:[%s219] sm:$0x3f] %vm501, %v500
      %p503 = scmp.lt.s32.totalorder %s16, 1
      %s504 = scalar_select %p503, %s16, 1
      %s505 = smul.addr %s504, 8
      %s506 = scalar_lea.vmem %s5, %s505
      // Predicated region
      $region41: #{tpu_custom_call.1} parent=39 // pred_check
        %p507 = pneg %p144
      $region42: #{tpu_custom_call.1} parent=39 // pred_check_branch
        %509 = sbr.rel (%p507) target = $region44
      $region43: #{tpu_custom_call.1} parent=39 // pred_region
        _
      $region44: #{tpu_custom_call.1} parent=39 // pred_fallthru
        _
    $region40: #{tpu_custom_call.1} parent=5 // pred_fallthru
      _
    %p510 = scmp.le.s32.totalorder 2, %s11
    // Predicated region
    $region45: #{tpu_custom_call.1} parent=5 // pred_check
      %p511 = pneg %p510
    $region46: #{tpu_custom_call.1} parent=5 // pred_check_branch
      %513 = sbr.rel (%p511) target = $region48
    $region47: #{tpu_custom_call.1} parent=5 // pred_region
      %s514 = ssub.s32 %s11, 2
      // Predicated region
      $region49: #{tpu_custom_call.1} parent=47 // pred_check
        %p515 = pneg %p150
      $region50: #{tpu_custom_call.1} parent=47 // pred_check_branch
        %517 = sbr.rel (%p515) target = $region52
      $region51: #{tpu_custom_call.1} parent=47 // pred_region
        %p518 = scmp.lt.s32.totalorder %s17, 1
        %s519 = scalar_select %p518, %s17, 1
        %s520 = smul.addr %s519, 8
        %s521 = scalar_lea.vmem %s5, %s520
      $region52: #{tpu_custom_call.1} parent=47 // pred_fallthru
        _
    $region48: #{tpu_custom_call.1} parent=5 // pred_fallthru
      _
  $region6: #{tpu_custom_call.1} parent=0 // loop_footer
    %s15 = sadd.s32 1, %s11
  $region7: #{tpu_custom_call.1} parent=0 // loop_footer_branch
    %10 = sbr.rel target = $region3
  $region8: #{tpu_custom_call.1} parent=0 // loop_exit
    _

</llo_original>
